<compile_context>
chip_gen: v5e
topology: v5e:2x2
jax: 0.10.0
libtpu: 0.0.40
codegen_flags: <defaults>
</compile_context>

<pallas_src>
import functools
import numpy as np
import jax
import jax.numpy as jnp
from jax.experimental import pallas as pl
from jax.experimental.pallas import tpu as pltpu

MIN_BIN_WIDTH = 1e-3
MIN_BIN_HEIGHT = 1e-3
MIN_DERIVATIVE = 1e-3
EPS = 1e-6


def _round_up(a, b):
    return ((a + b - 1) // b) * b


# ----------------------------------------------------------------------------
# Kernel: pure per-element spline evaluation on a lane-dense (dim, TB) tile.
# ----------------------------------------------------------------------------
def spline_kernel(x_ref, cw_ref, ibw_ref, ch_ref, bh_ref, delta_ref, d_ref,
                  y_ref, ld_ref, *, n_bins, lower, upper):
    K = n_bins
    x = x_ref[...]                                # (dim, TB), I/O dtype
    xf = x.astype(jnp.float32)

    cw = cw_ref[...]                              # (dim, K+1) knot x-positions
    ibw = ibw_ref[...]                            # (dim, K)   1 / bin_width
    ch = ch_ref[...]                              # (dim, K)   knot y-positions (bin start)
    bh = bh_ref[...]                              # (dim, K)   bin heights
    delta = delta_ref[...]                        # (dim, K)   bin_h / bin_w
    d = d_ref[...]                                # (dim, K+1) knot derivatives

    inside = (xf >= lower) & (xf <= upper)
    xin = jnp.clip(xf, lower, upper)

    # Fused bin search + parameter gather:
    # selected bin = max{ j : xin >= cw[:, j] }, j in [0, K-1]
    # (identical to searchsorted with +EPS on the last knot after clipping).
    sel_cw = cw[:, 0:1]
    sel_ibw = ibw[:, 0:1]
    sel_ch = ch[:, 0:1]
    sel_bh = bh[:, 0:1]
    sel_dl = delta[:, 0:1]
    sel_d0 = d[:, 0:1]
    sel_d1 = d[:, 1:2]
    for j in range(1, K):
        ge = xin >= cw[:, j:j + 1]                # (dim, TB)
        sel_cw = jnp.where(ge, cw[:, j:j + 1], sel_cw)
        sel_ibw = jnp.where(ge, ibw[:, j:j + 1], sel_ibw)
        sel_ch = jnp.where(ge, ch[:, j:j + 1], sel_ch)
        sel_bh = jnp.where(ge, bh[:, j:j + 1], sel_bh)
        sel_dl = jnp.where(ge, delta[:, j:j + 1], sel_dl)
        sel_d0 = jnp.where(ge, d[:, j:j + 1], sel_d0)
        sel_d1 = jnp.where(ge, d[:, j + 1:j + 2], sel_d1)

    theta = (xin - sel_cw) * sel_ibw
    one_m_theta = 1.0 - theta
    th2 = theta * theta
    t1mt = theta * one_m_theta

    numer = sel_bh * (sel_dl * th2 + sel_d0 * t1mt)
    denom = sel_dl + (sel_d0 + sel_d1 - 2.0 * sel_dl) * t1mt
    inv_denom = 1.0 / denom                       # denom > 0 by construction
    y_sp = sel_ch + numer * inv_denom

    dnum = (sel_dl * sel_dl) * (sel_d1 * th2
                                + 2.0 * sel_dl * t1mt
                                + sel_d0 * one_m_theta * one_m_theta)
    ld_sp = jnp.log(dnum * inv_denom * inv_denom)  # single log

    y_ref[...] = jnp.where(inside, y_sp, xf).astype(y_ref.dtype)
    ld_ref[...] = jnp.where(inside, ld_sp, 0.0).astype(ld_ref.dtype)


# ----------------------------------------------------------------------------
# Wrapper: parameter preprocessing (hoisted out of the kernel) + lane-dense
# layout + pallas_call.
# ----------------------------------------------------------------------------
def _preprocess_params(width, height, derivative, lower, upper):
    """Returns f32 tables: cw (dim,K+1), 1/bin_w (dim,K), ch_lo (dim,K),
    bin_h (dim,K), delta (dim,K), derivs (dim,K+1)."""
    dim, K = width.shape
    const = float(np.log(np.exp(1.0 - MIN_DERIVATIVE) - 1.0))
    unnorm_d = jnp.concatenate(
        [jnp.full((dim, 1), const, jnp.float32),
         derivative.astype(jnp.float32),
         jnp.full((dim, 1), const, jnp.float32)], axis=1)          # (dim, K+1)

    w = jax.nn.softmax(width.astype(jnp.float32), axis=-1)
    w = MIN_BIN_WIDTH + (1.0 - MIN_BIN_WIDTH * K) * w
    cw = jnp.concatenate([jnp.zeros((dim, 1), jnp.float32),
                          jnp.cumsum(w, axis=-1)], axis=-1)
    cw = (upper - lower) * cw + lower
    cw = cw.at[:, 0].set(lower).at[:, -1].set(upper)
    bin_w = cw[:, 1:] - cw[:, :-1]

    h = jax.nn.softmax(height.astype(jnp.float32), axis=-1)
    h = MIN_BIN_HEIGHT + (1.0 - MIN_BIN_HEIGHT * K) * h
    ch = jnp.concatenate([jnp.zeros((dim, 1), jnp.float32),
                          jnp.cumsum(h, axis=-1)], axis=-1)
    ch = (upper - lower) * ch + lower
    ch = ch.at[:, 0].set(lower).at[:, -1].set(upper)
    bin_h = ch[:, 1:] - ch[:, :-1]

    derivs = MIN_DERIVATIVE + jax.nn.softplus(unnorm_d)            # (dim, K+1)
    delta = bin_h / bin_w
    inv_bw = 1.0 / bin_w
    return cw, inv_bw, ch[:, :K], bin_h, delta, derivs


def spline_forward(x, width, height, derivative, lower=0.0, upper=1.0,
                   block_lanes=2048):
    """x: (B, dim); width/height: (dim, n_bins); derivative: (dim, n_bins-1)."""
    B, dim = x.shape
    K = width.shape[1]
    lower = float(lower)
    upper = float(upper)

    cw, inv_bw, ch_lo, bin_h, delta, derivs = _preprocess_params(
        width, height, derivative, lower, upper)

    # Lane-dense layout: batch axis -> lanes. Pick a tile that is a multiple of
    # 128 lanes, large enough to amortize grid-step overhead, and (for large B)
    # leaves >= 2 grid steps so megacore chips can split the work.
    TB = min(int(block_lanes), max(128, _round_up((B + 1) // 2, 128)))
    Bp = _round_up(B, TB)

    xt = x.T                                                       # (dim, B)
    if Bp != B:
        # pad with an in-domain value so the (discarded) padded lanes stay finite
        pad_val = lower + 0.5 * (upper - lower)
        xt = jnp.pad(xt, ((0, 0), (0, Bp - B)), constant_values=pad_val)

    kernel = functools.partial(spline_kernel, n_bins=K, lower=lower, upper=upper)
    param_spec_k = pl.BlockSpec((dim, K), lambda i: (0, 0))
    param_spec_k1 = pl.BlockSpec((dim, K + 1), lambda i: (0, 0))
    tile_spec = pl.BlockSpec((dim, TB), lambda i: (0, i))

    yt, ldt = pl.pallas_call(
        kernel,
        out_shape=(jax.ShapeDtypeStruct((dim, Bp), x.dtype),
                   jax.ShapeDtypeStruct((dim, Bp), x.dtype)),
        grid=(Bp // TB,),
        in_specs=[tile_spec,        # x^T
                  param_spec_k1,    # cw
                  param_spec_k,     # 1/bin_w
                  param_spec_k,     # ch (bin start)
                  param_spec_k,     # bin_h
                  param_spec_k,     # delta
                  param_spec_k1],   # derivatives
        out_specs=(tile_spec, tile_spec),
        compiler_params=pltpu.CompilerParams(dimension_semantics=("parallel",)),
    )(xt, cw, inv_bw, ch_lo, bin_h, delta, derivs)

    return yt[:, :B].T, ldt[:, :B].T


# ----------------------------------------------------------------------------
# Pure-JAX reference (mirrors the nflows/stribor math) for correctness check.
# ----------------------------------------------------------------------------
def spline_reference(x, width, height, derivative, lower=0.0, upper=1.0):
    B, dim = x.shape
    K = width.shape[1]
    const = np.log(np.exp(1.0 - MIN_DERIVATIVE) - 1.0)
    unnorm_d = jnp.concatenate([jnp.full((dim, 1), const), derivative,
                                jnp.full((dim, 1), const)], axis=1)

    w = jax.nn.softmax(width, axis=-1)
    w = MIN_BIN_WIDTH + (1 - MIN_BIN_WIDTH * K) * w
    cw = jnp.concatenate([jnp.zeros((dim, 1)), jnp.cumsum(w, axis=-1)], axis=-1)
    cw = (upper - lower) * cw + lower
    cw = cw.at[:, 0].set(lower).at[:, -1].set(upper)
    w = cw[:, 1:] - cw[:, :-1]

    h = jax.nn.softmax(height, axis=-1)
    h = MIN_BIN_HEIGHT + (1 - MIN_BIN_HEIGHT * K) * h
    ch = jnp.concatenate([jnp.zeros((dim, 1)), jnp.cumsum(h, axis=-1)], axis=-1)
    ch = (upper - lower) * ch + lower
    ch = ch.at[:, 0].set(lower).at[:, -1].set(upper)
    h = ch[:, 1:] - ch[:, :-1]

    d = MIN_DERIVATIVE + jax.nn.softplus(unnorm_d)   # (dim, K+1)

    inside = (x >= lower) & (x <= upper)
    xin = jnp.clip(x, lower, upper)
    cw_eps = cw.at[:, -1].add(EPS)
    idx = jnp.sum(xin[..., None] >= cw_eps[None, :, :], axis=-1) - 1
    idx = jnp.clip(idx, 0, K - 1)

    def gather(p):
        pb = jnp.broadcast_to(p[None], (B, dim, p.shape[1]))
        return jnp.take_along_axis(pb, idx[..., None], axis=-1)[..., 0]

    in_cw, in_bw = gather(cw[:, :K]), gather(w)
    in_ch, in_bh = gather(ch[:, :K]), gather(h)
    in_delta = gather(h / w)
    in_d, in_dp1 = gather(d[:, :K]), gather(d[:, 1:K + 1])

    theta = (xin - in_cw) / in_bw
    t1mt = theta * (1 - theta)
    numer = in_bh * (in_delta * theta ** 2 + in_d * t1mt)
    denom = in_delta + (in_d + in_dp1 - 2 * in_delta) * t1mt
    y = in_ch + numer / denom
    dnum = in_delta ** 2 * (in_dp1 * theta ** 2 + 2 * in_delta * t1mt + in_d * (1 - theta) ** 2)
    ld = jnp.log(dnum) - 2 * jnp.log(denom)
    return jnp.where(inside, y, x), jnp.where(inside, ld, 0.0)


if __name__ == "__main__":
    key = jax.random.PRNGKey(0)
    B, dim, n_bins = 16, 4, 5
    derivative_dim = n_bins - 1  # quadratic spline
    kx, kw, kh, kd = jax.random.split(key, 4)

    def xavier_uniform(k, shape):
        bound = float(np.sqrt(6.0 / (shape[0] + shape[1])))
        return jax.random.uniform(k, shape, jnp.float32, -bound, bound)

    width = xavier_uniform(kw, (dim, n_bins))
    height = xavier_uniform(kh, (dim, n_bins))
    derivative = xavier_uniform(kd, (dim, derivative_dim))
    # inputs partially inside and outside the (0, 1) spline domain
    x = jax.random.uniform(kx, (B, dim), jnp.float32, -0.25, 1.25)

    y, ld = spline_forward(x, width, height, derivative)
    jax.block_until_ready((y, ld))

    y_ref, ld_ref = spline_reference(x, width, height, derivative)
    np.testing.assert_allclose(np.asarray(y), np.asarray(y_ref), rtol=1e-5, atol=1e-5)
    np.testing.assert_allclose(np.asarray(ld), np.asarray(ld_ref), rtol=1e-5, atol=1e-5)

    print("KERNEL_OK")
</pallas_src>

<mosaic_0001>
module attributes {stable_mosaic.version = 11 : i64} {
  func.func @spline_kernel(%arg0: i32, %arg1: memref<4x128xf32, #tpu.memory_space<vmem>>, %arg2: memref<4x6xf32, #tpu.memory_space<vmem>>, %arg3: memref<4x5xf32, #tpu.memory_space<vmem>>, %arg4: memref<4x5xf32, #tpu.memory_space<vmem>>, %arg5: memref<4x5xf32, #tpu.memory_space<vmem>>, %arg6: memref<4x5xf32, #tpu.memory_space<vmem>>, %arg7: memref<4x6xf32, #tpu.memory_space<vmem>>, %arg8: memref<4x128xf32, #tpu.memory_space<vmem>>, %arg9: memref<4x128xf32, #tpu.memory_space<vmem>>) attributes {dimension_semantics = [#tpu.dimension_semantics<parallel>], iteration_bounds = array<i64: 1>, scalar_prefetch = 0 : i64, scratch_operands = 0 : i64, tpu.core_type = #tpu.core_type<tc>, window_params = [{transform_indices = @transform_0, window_bounds = array<i64: 4, 128>}, {pipeline_mode = #tpu.pipeline_mode<synchronous>, transform_indices = @transform_1, window_bounds = array<i64: 4, 6>}, {pipeline_mode = #tpu.pipeline_mode<synchronous>, transform_indices = @transform_2, window_bounds = array<i64: 4, 5>}, {pipeline_mode = #tpu.pipeline_mode<synchronous>, transform_indices = @transform_3, window_bounds = array<i64: 4, 5>}, {pipeline_mode = #tpu.pipeline_mode<synchronous>, transform_indices = @transform_4, window_bounds = array<i64: 4, 5>}, {pipeline_mode = #tpu.pipeline_mode<synchronous>, transform_indices = @transform_5, window_bounds = array<i64: 4, 5>}, {pipeline_mode = #tpu.pipeline_mode<synchronous>, transform_indices = @transform_6, window_bounds = array<i64: 4, 6>}, {transform_indices = @transform_7, window_bounds = array<i64: 4, 128>}, {transform_indices = @transform_8, window_bounds = array<i64: 4, 128>}]} {
    %c0 = arith.constant 0 : index
    %c0_0 = arith.constant 0 : index
    %0 = vector.load %arg1[%c0, %c0_0] : memref<4x128xf32, #tpu.memory_space<vmem>>, vector<4x128xf32>
    %c0_1 = arith.constant 0 : index
    %c0_2 = arith.constant 0 : index
    %1 = vector.load %arg2[%c0_1, %c0_2] : memref<4x6xf32, #tpu.memory_space<vmem>>, vector<4x6xf32>
    %c0_3 = arith.constant 0 : index
    %c0_4 = arith.constant 0 : index
    %2 = vector.load %arg3[%c0_3, %c0_4] : memref<4x5xf32, #tpu.memory_space<vmem>>, vector<4x5xf32>
    %c0_5 = arith.constant 0 : index
    %c0_6 = arith.constant 0 : index
    %3 = vector.load %arg4[%c0_5, %c0_6] : memref<4x5xf32, #tpu.memory_space<vmem>>, vector<4x5xf32>
    %c0_7 = arith.constant 0 : index
    %c0_8 = arith.constant 0 : index
    %4 = vector.load %arg5[%c0_7, %c0_8] : memref<4x5xf32, #tpu.memory_space<vmem>>, vector<4x5xf32>
    %c0_9 = arith.constant 0 : index
    %c0_10 = arith.constant 0 : index
    %5 = vector.load %arg6[%c0_9, %c0_10] : memref<4x5xf32, #tpu.memory_space<vmem>>, vector<4x5xf32>
    %c0_11 = arith.constant 0 : index
    %c0_12 = arith.constant 0 : index
    %6 = vector.load %arg7[%c0_11, %c0_12] : memref<4x6xf32, #tpu.memory_space<vmem>>, vector<4x6xf32>
    %cst = arith.constant 0.000000e+00 : f32
    %7 = vector.broadcast %cst : f32 to vector<4x128xf32>
    %8 = arith.cmpf oge, %0, %7 : vector<4x128xf32>
    %cst_13 = arith.constant 1.000000e+00 : f32
    %9 = vector.broadcast %cst_13 : f32 to vector<4x128xf32>
    %10 = arith.cmpf ole, %0, %9 : vector<4x128xf32>
    %11 = arith.andi %8, %10 : vector<4x128xi1>
    %cst_14 = arith.constant 0.000000e+00 : f32
    %cst_15 = arith.constant 1.000000e+00 : f32
    %12 = vector.broadcast %cst_14 : f32 to vector<4x128xf32>
    %13 = arith.maximumf %12, %0 : vector<4x128xf32>
    %14 = vector.broadcast %cst_15 : f32 to vector<4x128xf32>
    %15 = arith.minimumf %14, %13 : vector<4x128xf32>
    %16 = vector.extract_strided_slice %1 {offsets = [0, 0], sizes = [4, 1], strides = [1, 1]} : vector<4x6xf32> to vector<4x1xf32>
    %17 = vector.extract_strided_slice %2 {offsets = [0, 0], sizes = [4, 1], strides = [1, 1]} : vector<4x5xf32> to vector<4x1xf32>
    %18 = vector.extract_strided_slice %3 {offsets = [0, 0], sizes = [4, 1], strides = [1, 1]} : vector<4x5xf32> to vector<4x1xf32>
    %19 = vector.extract_strided_slice %4 {offsets = [0, 0], sizes = [4, 1], strides = [1, 1]} : vector<4x5xf32> to vector<4x1xf32>
    %20 = vector.extract_strided_slice %5 {offsets = [0, 0], sizes = [4, 1], strides = [1, 1]} : vector<4x5xf32> to vector<4x1xf32>
    %21 = vector.extract_strided_slice %6 {offsets = [0, 0], sizes = [4, 1], strides = [1, 1]} : vector<4x6xf32> to vector<4x1xf32>
    %22 = vector.extract_strided_slice %6 {offsets = [0, 1], sizes = [4, 1], strides = [1, 1]} : vector<4x6xf32> to vector<4x1xf32>
    %23 = vector.extract_strided_slice %1 {offsets = [0, 1], sizes = [4, 1], strides = [1, 1]} : vector<4x6xf32> to vector<4x1xf32>
    %24 = vector.broadcast %23 : vector<4x1xf32> to vector<4x128xf32>
    %25 = arith.cmpf oge, %15, %24 : vector<4x128xf32>
    %26 = vector.extract_strided_slice %1 {offsets = [0, 1], sizes = [4, 1], strides = [1, 1]} : vector<4x6xf32> to vector<4x1xf32>
    %27 = vector.shape_cast %26 : vector<4x1xf32> to vector<4x1xf32>
    %28 = vector.broadcast %27 : vector<4x1xf32> to vector<4x128xf32>
    %29 = vector.shape_cast %16 : vector<4x1xf32> to vector<4x1xf32>
    %30 = vector.broadcast %29 : vector<4x1xf32> to vector<4x128xf32>
    %31 = arith.select %25, %28, %30 : vector<4x128xi1>, vector<4x128xf32>
    %32 = vector.extract_strided_slice %2 {offsets = [0, 1], sizes = [4, 1], strides = [1, 1]} : vector<4x5xf32> to vector<4x1xf32>
    %33 = vector.shape_cast %32 : vector<4x1xf32> to vector<4x1xf32>
    %34 = vector.broadcast %33 : vector<4x1xf32> to vector<4x128xf32>
    %35 = vector.shape_cast %17 : vector<4x1xf32> to vector<4x1xf32>
    %36 = vector.broadcast %35 : vector<4x1xf32> to vector<4x128xf32>
    %37 = arith.select %25, %34, %36 : vector<4x128xi1>, vector<4x128xf32>
    %38 = vector.extract_strided_slice %3 {offsets = [0, 1], sizes = [4, 1], strides = [1, 1]} : vector<4x5xf32> to vector<4x1xf32>
    %39 = vector.shape_cast %38 : vector<4x1xf32> to vector<4x1xf32>
    %40 = vector.broadcast %39 : vector<4x1xf32> to vector<4x128xf32>
    %41 = vector.shape_cast %18 : vector<4x1xf32> to vector<4x1xf32>
    %42 = vector.broadcast %41 : vector<4x1xf32> to vector<4x128xf32>
    %43 = arith.select %25, %40, %42 : vector<4x128xi1>, vector<4x128xf32>
    %44 = vector.extract_strided_slice %4 {offsets = [0, 1], sizes = [4, 1], strides = [1, 1]} : vector<4x5xf32> to vector<4x1xf32>
    %45 = vector.shape_cast %44 : vector<4x1xf32> to vector<4x1xf32>
    %46 = vector.broadcast %45 : vector<4x1xf32> to vector<4x128xf32>
    %47 = vector.shape_cast %19 : vector<4x1xf32> to vector<4x1xf32>
    %48 = vector.broadcast %47 : vector<4x1xf32> to vector<4x128xf32>
    %49 = arith.select %25, %46, %48 : vector<4x128xi1>, vector<4x128xf32>
    %50 = vector.extract_strided_slice %5 {offsets = [0, 1], sizes = [4, 1], strides = [1, 1]} : vector<4x5xf32> to vector<4x1xf32>
    %51 = vector.shape_cast %50 : vector<4x1xf32> to vector<4x1xf32>
    %52 = vector.broadcast %51 : vector<4x1xf32> to vector<4x128xf32>
    %53 = vector.shape_cast %20 : vector<4x1xf32> to vector<4x1xf32>
    %54 = vector.broadcast %53 : vector<4x1xf32> to vector<4x128xf32>
    %55 = arith.select %25, %52, %54 : vector<4x128xi1>, vector<4x128xf32>
    %56 = vector.extract_strided_slice %6 {offsets = [0, 1], sizes = [4, 1], strides = [1, 1]} : vector<4x6xf32> to vector<4x1xf32>
    %57 = vector.shape_cast %56 : vector<4x1xf32> to vector<4x1xf32>
    %58 = vector.broadcast %57 : vector<4x1xf32> to vector<4x128xf32>
    %59 = vector.shape_cast %21 : vector<4x1xf32> to vector<4x1xf32>
    %60 = vector.broadcast %59 : vector<4x1xf32> to vector<4x128xf32>
    %61 = arith.select %25, %58, %60 : vector<4x128xi1>, vector<4x128xf32>
    %62 = vector.extract_strided_slice %6 {offsets = [0, 2], sizes = [4, 1], strides = [1, 1]} : vector<4x6xf32> to vector<4x1xf32>
    %63 = vector.shape_cast %62 : vector<4x1xf32> to vector<4x1xf32>
    %64 = vector.broadcast %63 : vector<4x1xf32> to vector<4x128xf32>
    %65 = vector.shape_cast %22 : vector<4x1xf32> to vector<4x1xf32>
    %66 = vector.broadcast %65 : vector<4x1xf32> to vector<4x128xf32>
    %67 = arith.select %25, %64, %66 : vector<4x128xi1>, vector<4x128xf32>
    %68 = vector.extract_strided_slice %1 {offsets = [0, 2], sizes = [4, 1], strides = [1, 1]} : vector<4x6xf32> to vector<4x1xf32>
    %69 = vector.broadcast %68 : vector<4x1xf32> to vector<4x128xf32>
    %70 = arith.cmpf oge, %15, %69 : vector<4x128xf32>
    %71 = vector.extract_strided_slice %1 {offsets = [0, 2], sizes = [4, 1], strides = [1, 1]} : vector<4x6xf32> to vector<4x1xf32>
    %72 = vector.shape_cast %71 : vector<4x1xf32> to vector<4x1xf32>
    %73 = vector.broadcast %72 : vector<4x1xf32> to vector<4x128xf32>
    %74 = arith.select %70, %73, %31 : vector<4x128xi1>, vector<4x128xf32>
    %75 = vector.extract_strided_slice %2 {offsets = [0, 2], sizes = [4, 1], strides = [1, 1]} : vector<4x5xf32> to vector<4x1xf32>
    %76 = vector.shape_cast %75 : vector<4x1xf32> to vector<4x1xf32>
    %77 = vector.broadcast %76 : vector<4x1xf32> to vector<4x128xf32>
    %78 = arith.select %70, %77, %37 : vector<4x128xi1>, vector<4x128xf32>
    %79 = vector.extract_strided_slice %3 {offsets = [0, 2], sizes = [4, 1], strides = [1, 1]} : vector<4x5xf32> to vector<4x1xf32>
    %80 = vector.shape_cast %79 : vector<4x1xf32> to vector<4x1xf32>
    %81 = vector.broadcast %80 : vector<4x1xf32> to vector<4x128xf32>
    %82 = arith.select %70, %81, %43 : vector<4x128xi1>, vector<4x128xf32>
    %83 = vector.extract_strided_slice %4 {offsets = [0, 2], sizes = [4, 1], strides = [1, 1]} : vector<4x5xf32> to vector<4x1xf32>
    %84 = vector.shape_cast %83 : vector<4x1xf32> to vector<4x1xf32>
    %85 = vector.broadcast %84 : vector<4x1xf32> to vector<4x128xf32>
    %86 = arith.select %70, %85, %49 : vector<4x128xi1>, vector<4x128xf32>
    %87 = vector.extract_strided_slice %5 {offsets = [0, 2], sizes = [4, 1], strides = [1, 1]} : vector<4x5xf32> to vector<4x1xf32>
    %88 = vector.shape_cast %87 : vector<4x1xf32> to vector<4x1xf32>
    %89 = vector.broadcast %88 : vector<4x1xf32> to vector<4x128xf32>
    %90 = arith.select %70, %89, %55 : vector<4x128xi1>, vector<4x128xf32>
    %91 = vector.extract_strided_slice %6 {offsets = [0, 2], sizes = [4, 1], strides = [1, 1]} : vector<4x6xf32> to vector<4x1xf32>
    %92 = vector.shape_cast %91 : vector<4x1xf32> to vector<4x1xf32>
    %93 = vector.broadcast %92 : vector<4x1xf32> to vector<4x128xf32>
    %94 = arith.select %70, %93, %61 : vector<4x128xi1>, vector<4x128xf32>
    %95 = vector.extract_strided_slice %6 {offsets = [0, 3], sizes = [4, 1], strides = [1, 1]} : vector<4x6xf32> to vector<4x1xf32>
    %96 = vector.shape_cast %95 : vector<4x1xf32> to vector<4x1xf32>
    %97 = vector.broadcast %96 : vector<4x1xf32> to vector<4x128xf32>
    %98 = arith.select %70, %97, %67 : vector<4x128xi1>, vector<4x128xf32>
    %99 = vector.extract_strided_slice %1 {offsets = [0, 3], sizes = [4, 1], strides = [1, 1]} : vector<4x6xf32> to vector<4x1xf32>
    %100 = vector.broadcast %99 : vector<4x1xf32> to vector<4x128xf32>
    %101 = arith.cmpf oge, %15, %100 : vector<4x128xf32>
    %102 = vector.extract_strided_slice %1 {offsets = [0, 3], sizes = [4, 1], strides = [1, 1]} : vector<4x6xf32> to vector<4x1xf32>
    %103 = vector.shape_cast %102 : vector<4x1xf32> to vector<4x1xf32>
    %104 = vector.broadcast %103 : vector<4x1xf32> to vector<4x128xf32>
    %105 = arith.select %101, %104, %74 : vector<4x128xi1>, vector<4x128xf32>
    %106 = vector.extract_strided_slice %2 {offsets = [0, 3], sizes = [4, 1], strides = [1, 1]} : vector<4x5xf32> to vector<4x1xf32>
    %107 = vector.shape_cast %106 : vector<4x1xf32> to vector<4x1xf32>
    %108 = vector.broadcast %107 : vector<4x1xf32> to vector<4x128xf32>
    %109 = arith.select %101, %108, %78 : vector<4x128xi1>, vector<4x128xf32>
    %110 = vector.extract_strided_slice %3 {offsets = [0, 3], sizes = [4, 1], strides = [1, 1]} : vector<4x5xf32> to vector<4x1xf32>
    %111 = vector.shape_cast %110 : vector<4x1xf32> to vector<4x1xf32>
    %112 = vector.broadcast %111 : vector<4x1xf32> to vector<4x128xf32>
    %113 = arith.select %101, %112, %82 : vector<4x128xi1>, vector<4x128xf32>
    %114 = vector.extract_strided_slice %4 {offsets = [0, 3], sizes = [4, 1], strides = [1, 1]} : vector<4x5xf32> to vector<4x1xf32>
    %115 = vector.shape_cast %114 : vector<4x1xf32> to vector<4x1xf32>
    %116 = vector.broadcast %115 : vector<4x1xf32> to vector<4x128xf32>
    %117 = arith.select %101, %116, %86 : vector<4x128xi1>, vector<4x128xf32>
    %118 = vector.extract_strided_slice %5 {offsets = [0, 3], sizes = [4, 1], strides = [1, 1]} : vector<4x5xf32> to vector<4x1xf32>
    %119 = vector.shape_cast %118 : vector<4x1xf32> to vector<4x1xf32>
    %120 = vector.broadcast %119 : vector<4x1xf32> to vector<4x128xf32>
    %121 = arith.select %101, %120, %90 : vector<4x128xi1>, vector<4x128xf32>
    %122 = vector.extract_strided_slice %6 {offsets = [0, 3], sizes = [4, 1], strides = [1, 1]} : vector<4x6xf32> to vector<4x1xf32>
    %123 = vector.shape_cast %122 : vector<4x1xf32> to vector<4x1xf32>
    %124 = vector.broadcast %123 : vector<4x1xf32> to vector<4x128xf32>
    %125 = arith.select %101, %124, %94 : vector<4x128xi1>, vector<4x128xf32>
    %126 = vector.extract_strided_slice %6 {offsets = [0, 4], sizes = [4, 1], strides = [1, 1]} : vector<4x6xf32> to vector<4x1xf32>
    %127 = vector.shape_cast %126 : vector<4x1xf32> to vector<4x1xf32>
    %128 = vector.broadcast %127 : vector<4x1xf32> to vector<4x128xf32>
    %129 = arith.select %101, %128, %98 : vector<4x128xi1>, vector<4x128xf32>
    %130 = vector.extract_strided_slice %1 {offsets = [0, 4], sizes = [4, 1], strides = [1, 1]} : vector<4x6xf32> to vector<4x1xf32>
    %131 = vector.broadcast %130 : vector<4x1xf32> to vector<4x128xf32>
    %132 = arith.cmpf oge, %15, %131 : vector<4x128xf32>
    %133 = vector.extract_strided_slice %1 {offsets = [0, 4], sizes = [4, 1], strides = [1, 1]} : vector<4x6xf32> to vector<4x1xf32>
    %134 = vector.shape_cast %133 : vector<4x1xf32> to vector<4x1xf32>
    %135 = vector.broadcast %134 : vector<4x1xf32> to vector<4x128xf32>
    %136 = arith.select %132, %135, %105 : vector<4x128xi1>, vector<4x128xf32>
    %137 = vector.extract_strided_slice %2 {offsets = [0, 4], sizes = [4, 1], strides = [1, 1]} : vector<4x5xf32> to vector<4x1xf32>
    %138 = vector.shape_cast %137 : vector<4x1xf32> to vector<4x1xf32>
    %139 = vector.broadcast %138 : vector<4x1xf32> to vector<4x128xf32>
    %140 = arith.select %132, %139, %109 : vector<4x128xi1>, vector<4x128xf32>
    %141 = vector.extract_strided_slice %3 {offsets = [0, 4], sizes = [4, 1], strides = [1, 1]} : vector<4x5xf32> to vector<4x1xf32>
    %142 = vector.shape_cast %141 : vector<4x1xf32> to vector<4x1xf32>
    %143 = vector.broadcast %142 : vector<4x1xf32> to vector<4x128xf32>
    %144 = arith.select %132, %143, %113 : vector<4x128xi1>, vector<4x128xf32>
    %145 = vector.extract_strided_slice %4 {offsets = [0, 4], sizes = [4, 1], strides = [1, 1]} : vector<4x5xf32> to vector<4x1xf32>
    %146 = vector.shape_cast %145 : vector<4x1xf32> to vector<4x1xf32>
    %147 = vector.broadcast %146 : vector<4x1xf32> to vector<4x128xf32>
    %148 = arith.select %132, %147, %117 : vector<4x128xi1>, vector<4x128xf32>
    %149 = vector.extract_strided_slice %5 {offsets = [0, 4], sizes = [4, 1], strides = [1, 1]} : vector<4x5xf32> to vector<4x1xf32>
    %150 = vector.shape_cast %149 : vector<4x1xf32> to vector<4x1xf32>
    %151 = vector.broadcast %150 : vector<4x1xf32> to vector<4x128xf32>
    %152 = arith.select %132, %151, %121 : vector<4x128xi1>, vector<4x128xf32>
    %153 = vector.extract_strided_slice %6 {offsets = [0, 4], sizes = [4, 1], strides = [1, 1]} : vector<4x6xf32> to vector<4x1xf32>
    %154 = vector.shape_cast %153 : vector<4x1xf32> to vector<4x1xf32>
    %155 = vector.broadcast %154 : vector<4x1xf32> to vector<4x128xf32>
    %156 = arith.select %132, %155, %125 : vector<4x128xi1>, vector<4x128xf32>
    %157 = vector.extract_strided_slice %6 {offsets = [0, 5], sizes = [4, 1], strides = [1, 1]} : vector<4x6xf32> to vector<4x1xf32>
    %158 = vector.shape_cast %157 : vector<4x1xf32> to vector<4x1xf32>
    %159 = vector.broadcast %158 : vector<4x1xf32> to vector<4x128xf32>
    %160 = arith.select %132, %159, %129 : vector<4x128xi1>, vector<4x128xf32>
    %161 = arith.subf %15, %136 : vector<4x128xf32>
    %162 = arith.mulf %161, %140 : vector<4x128xf32>
    %cst_16 = arith.constant 1.000000e+00 : f32
    %163 = vector.broadcast %cst_16 : f32 to vector<4x128xf32>
    %164 = arith.subf %163, %162 : vector<4x128xf32>
    %165 = arith.mulf %162, %162 : vector<4x128xf32>
    %166 = arith.mulf %162, %164 : vector<4x128xf32>
    %167 = arith.mulf %152, %165 : vector<4x128xf32>
    %168 = arith.mulf %156, %166 : vector<4x128xf32>
    %169 = arith.addf %167, %168 : vector<4x128xf32>
    %170 = arith.mulf %148, %169 : vector<4x128xf32>
    %171 = arith.addf %156, %160 : vector<4x128xf32>
    %cst_17 = arith.constant 2.000000e+00 : f32
    %172 = vector.broadcast %cst_17 : f32 to vector<4x128xf32>
    %173 = arith.mulf %172, %152 : vector<4x128xf32>
    %174 = arith.subf %171, %173 : vector<4x128xf32>
    %175 = arith.mulf %174, %166 : vector<4x128xf32>
    %176 = arith.addf %152, %175 : vector<4x128xf32>
    %cst_18 = arith.constant 1.000000e+00 : f32
    %177 = vector.broadcast %cst_18 : f32 to vector<4x128xf32>
    %178 = arith.divf %177, %176 : vector<4x128xf32>
    %179 = arith.mulf %170, %178 : vector<4x128xf32>
    %180 = arith.addf %144, %179 : vector<4x128xf32>
    %181 = arith.mulf %152, %152 : vector<4x128xf32>
    %182 = arith.mulf %160, %165 : vector<4x128xf32>
    %cst_19 = arith.constant 2.000000e+00 : f32
    %183 = vector.broadcast %cst_19 : f32 to vector<4x128xf32>
    %184 = arith.mulf %183, %152 : vector<4x128xf32>
    %185 = arith.mulf %184, %166 : vector<4x128xf32>
    %186 = arith.addf %182, %185 : vector<4x128xf32>
    %187 = arith.mulf %156, %164 : vector<4x128xf32>
    %188 = arith.mulf %187, %164 : vector<4x128xf32>
    %189 = arith.addf %186, %188 : vector<4x128xf32>
    %190 = arith.mulf %181, %189 : vector<4x128xf32>
    %191 = arith.mulf %190, %178 : vector<4x128xf32>
    %192 = arith.mulf %191, %178 : vector<4x128xf32>
    %193 = math.log %192 : vector<4x128xf32>
    %194 = arith.select %11, %180, %0 : vector<4x128xi1>, vector<4x128xf32>
    %c0_20 = arith.constant 0 : index
    %c0_21 = arith.constant 0 : index
    %195 = vector.load %arg8[%c0_20, %c0_21] : memref<4x128xf32, #tpu.memory_space<vmem>>, vector<4x128xf32>
    tpu.vector_store %arg8[%c0_20, %c0_21], %194 {strides = array<i32>} : memref<4x128xf32, #tpu.memory_space<vmem>>, vector<4x128xf32>,
    %cst_22 = arith.constant 0.000000e+00 : f32
    %196 = vector.broadcast %cst_22 : f32 to vector<4x128xf32>
    %197 = arith.select %11, %193, %196 : vector<4x128xi1>, vector<4x128xf32>
    %c0_23 = arith.constant 0 : index
    %c0_24 = arith.constant 0 : index
    %198 = vector.load %arg9[%c0_23, %c0_24] : memref<4x128xf32, #tpu.memory_space<vmem>>, vector<4x128xf32>
    tpu.vector_store %arg9[%c0_23, %c0_24], %197 {strides = array<i32>} : memref<4x128xf32, #tpu.memory_space<vmem>>, vector<4x128xf32>,
    return
  }
  func.func @transform_0(%arg0: i32) -> (i32, i32) {
    %c0_i32 = arith.constant 0 : i32
    %c0_i32_0 = arith.constant 0 : i32
    return %c0_i32, %arg0 : i32, i32
  }
  func.func @transform_1(%arg0: i32) -> (i32, i32) {
    %c0_i32 = arith.constant 0 : i32
    %c0_i32_0 = arith.constant 0 : i32
    %c0_i32_1 = arith.constant 0 : i32
    return %c0_i32, %c0_i32_0 : i32, i32
  }
  func.func @transform_2(%arg0: i32) -> (i32, i32) {
    %c0_i32 = arith.constant 0 : i32
    %c0_i32_0 = arith.constant 0 : i32
    %c0_i32_1 = arith.constant 0 : i32
    return %c0_i32, %c0_i32_0 : i32, i32
  }
  func.func @transform_3(%arg0: i32) -> (i32, i32) {
    %c0_i32 = arith.constant 0 : i32
    %c0_i32_0 = arith.constant 0 : i32
    %c0_i32_1 = arith.constant 0 : i32
    return %c0_i32, %c0_i32_0 : i32, i32
  }
  func.func @transform_4(%arg0: i32) -> (i32, i32) {
    %c0_i32 = arith.constant 0 : i32
    %c0_i32_0 = arith.constant 0 : i32
    %c0_i32_1 = arith.constant 0 : i32
    return %c0_i32, %c0_i32_0 : i32, i32
  }
  func.func @transform_5(%arg0: i32) -> (i32, i32) {
    %c0_i32 = arith.constant 0 : i32
    %c0_i32_0 = arith.constant 0 : i32
    %c0_i32_1 = arith.constant 0 : i32
    return %c0_i32, %c0_i32_0 : i32, i32
  }
  func.func @transform_6(%arg0: i32) -> (i32, i32) {
    %c0_i32 = arith.constant 0 : i32
    %c0_i32_0 = arith.constant 0 : i32
    %c0_i32_1 = arith.constant 0 : i32
    return %c0_i32, %c0_i32_0 : i32, i32
  }
  func.func @transform_7(%arg0: i32) -> (i32, i32) {
    %c0_i32 = arith.constant 0 : i32
    %c0_i32_0 = arith.constant 0 : i32
    return %c0_i32, %arg0 : i32, i32
  }
  func.func @transform_8(%arg0: i32) -> (i32, i32) {
    %c0_i32 = arith.constant 0 : i32
    %c0_i32_0 = arith.constant 0 : i32
    return %c0_i32, %arg0 : i32, i32
  }
}

</mosaic_0001>

<llo_original>
// kernel: tpu_custom_call.1
$region0: #{tpu_custom_call.1}
  #allocation0 [shape = 'u32[]', space=smem, size = 0x4, offset = 0x4, fixed_abs, tag = 'smem constant byte address 0x4 - core index']
  #allocation1 [shape = 'u32[72,128]{1,0:T(1,128)}', space=vmem, size = 0x9000, scoped, tag = 'internal scratch']
  %s0 = inlined_call_operand.hbm [shape: f32[4,128], index: 0, kind: input, shape index: {}]
  %s1 = inlined_call_operand.hbm [shape: f32[4,6], index: 1, kind: input, shape index: {}]
  %s2 = inlined_call_operand.hbm [shape: f32[4,5], index: 2, kind: input, shape index: {}]
  %s3 = inlined_call_operand.hbm [shape: f32[4,5], index: 3, kind: input, shape index: {}]
  %s4 = inlined_call_operand.hbm [shape: f32[4,5], index: 4, kind: input, shape index: {}]
  %s5 = inlined_call_operand.vmem [shape: f32[4,5], index: 5, kind: input, shape index: {}]
  %s6 = inlined_call_operand.hbm [shape: f32[4,6], index: 6, kind: input, shape index: {}]
  %s7 = inlined_call_operand.hbm [shape: f32[4,128], index: 7, kind: output, shape index: {0}]
  %s8 = inlined_call_operand.hbm [shape: f32[4,128], index: 8, kind: output, shape index: {1}]
  %9 = xla_tuple %s7, %s8
  %s10 = sld [smem:[#allocation0]]
  $region70: #{tpu_custom_call.1} parent=0
    _
  %s12 = ssub.s32 1, %s10
  %s13 = scalar_select 0, %s12, %s10
  $region1: #{tpu_custom_call.1} parent=0
    #allocation2 [shape = 'u8[2048]{0}', space=vmem, size = 0x800, scoped, tag = 'input window, operand 0, single buffered']
    #allocation3 [shape = 's32[1]{0}', space=sflag, size = 0x4, scoped, tag = 'scoped memory for tpu_custom_call.1']
    #allocation4 [shape = 's32[1]{0}', space=sflag, size = 0x4, scoped, tag = 'scoped memory for tpu_custom_call.1']
    #allocation5 [shape = 'u8[2048]{0}', space=vmem, size = 0x800, scoped, tag = 'input window, operand 1, single buffered']
    #allocation6 [shape = 's32[1]{0}', space=sflag, size = 0x4, scoped, tag = 'scoped memory for tpu_custom_call.1']
    #allocation7 [shape = 'u8[2048]{0}', space=vmem, size = 0x800, scoped, tag = 'input window, operand 2, single buffered']
    #allocation8 [shape = 'u8[2048]{0}', space=vmem, size = 0x800, scoped, tag = 'input window, operand 3, single buffered']
    #allocation9 [shape = 's32[1]{0}', space=sflag, size = 0x4, scoped, tag = 'scoped memory for tpu_custom_call.1']
    #allocation10 [shape = 'u8[2048]{0}', space=vmem, size = 0x800, scoped, tag = 'input window, operand 4, single buffered']
    #allocation11 [shape = 'u8[2048]{0}', space=vmem, size = 0x800, scoped, tag = 'input window, operand 6, single buffered']
    #allocation12 [shape = 's32[1]{0}', space=sflag, size = 0x4, scoped, tag = 'scoped memory for tpu_custom_call.1']
    #allocation13 [shape = 'u8[2048]{0}', space=vmem, size = 0x800, scoped, tag = 'output window, operand 0, single buffered']
    #allocation14 [shape = 'u8[2048]{0}', space=vmem, size = 0x800, scoped, tag = 'output window, operand 1, single buffered']
    #allocation15 [shape = 's32[1]{0}', space=sflag, size = 0x4, scoped, tag = 'scoped memory for tpu_custom_call.1']
    %14 = vsyncpa [#allocation3], 0
    %15 = vsyncpa [#allocation6], 0
    %16 = vsyncpa [#allocation9], 0
    %17 = vsyncpa [#allocation12], 0
    %18 = vsyncpa [#allocation4], 0
    %19 = vsyncpa [#allocation15], 0
    // Predicated region
    $region2: #{tpu_custom_call.1} parent=1 // pred_check
      _
    $region3: #{tpu_custom_call.1} parent=1 // pred_check_branch
      %21 = sbr.rel (0) target = $region5
    $region4: #{tpu_custom_call.1} parent=1 // pred_region
      %23 = vsyncadd [#allocation3], 0
      %s25 = sshll.u32 %s0, 4
      %s26 = int_to_ptr.hbm [resolvable:$true] %s25
      %s27 = sshll.u32 [#allocation2], 4
      %s28 = int_to_ptr.vmem [resolvable:$true] %s27
      %30 = dma.hbm_to_vmem [thread:$0]  %s26, 64, %s28, [#allocation3]
    $region5: #{tpu_custom_call.1} parent=1 // pred_fallthru
      _
    // Predicated region
    $region6: #{tpu_custom_call.1} parent=1 // pred_check
      _
    $region7: #{tpu_custom_call.1} parent=1 // pred_check_branch
      %32 = sbr.rel (0) target = $region9
    $region8: #{tpu_custom_call.1} parent=1 // pred_region
      %34 = vsyncadd [#allocation6], 0
      %s36 = sshll.u32 %s1, 4
      %s37 = int_to_ptr.hbm [resolvable:$true] %s36
      %s38 = sshll.u32 [#allocation5], 4
      %s39 = int_to_ptr.vmem [resolvable:$true] %s38
      %41 = dma.hbm_to_vmem [thread:$0]  %s37, 64, %s39, [#allocation6]
    $region9: #{tpu_custom_call.1} parent=1 // pred_fallthru
      _
    // Predicated region
    $region10: #{tpu_custom_call.1} parent=1 // pred_check
      _
    $region11: #{tpu_custom_call.1} parent=1 // pred_check_branch
      %43 = sbr.rel (0) target = $region13
    $region12: #{tpu_custom_call.1} parent=1 // pred_region
      %45 = vsyncadd [#allocation6], 0
      %s47 = sshll.u32 %s2, 4
      %s48 = int_to_ptr.hbm [resolvable:$true] %s47
      %s49 = sshll.u32 [#allocation7], 4
      %s50 = int_to_ptr.vmem [resolvable:$true] %s49
      %52 = dma.hbm_to_vmem [thread:$0]  %s48, 64, %s50, [#allocation6]
    $region13: #{tpu_custom_call.1} parent=1 // pred_fallthru
      _
    // Predicated region
    $region14: #{tpu_custom_call.1} parent=1 // pred_check
      _
    $region15: #{tpu_custom_call.1} parent=1 // pred_check_branch
      %54 = sbr.rel (0) target = $region17
    $region16: #{tpu_custom_call.1} parent=1 // pred_region
      %56 = vsyncadd [#allocation9], 0
      %s58 = sshll.u32 %s3, 4
      %s59 = int_to_ptr.hbm [resolvable:$true] %s58
      %s60 = sshll.u32 [#allocation8], 4
      %s61 = int_to_ptr.vmem [resolvable:$true] %s60
      %63 = dma.hbm_to_vmem [thread:$0]  %s59, 64, %s61, [#allocation9]
    $region17: #{tpu_custom_call.1} parent=1 // pred_fallthru
      _
    // Predicated region
    $region18: #{tpu_custom_call.1} parent=1 // pred_check
      _
    $region19: #{tpu_custom_call.1} parent=1 // pred_check_branch
      %65 = sbr.rel (0) target = $region21
    $region20: #{tpu_custom_call.1} parent=1 // pred_region
      %67 = vsyncadd [#allocation9], 0
      %s69 = sshll.u32 %s4, 4
      %s70 = int_to_ptr.hbm [resolvable:$true] %s69
      %s71 = sshll.u32 [#allocation10], 4
      %s72 = int_to_ptr.vmem [resolvable:$true] %s71
      %74 = dma.hbm_to_vmem [thread:$0]  %s70, 64, %s72, [#allocation9]
    $region21: #{tpu_custom_call.1} parent=1 // pred_fallthru
      _
    // Predicated region
    $region22: #{tpu_custom_call.1} parent=1 // pred_check
      _
    $region23: #{tpu_custom_call.1} parent=1 // pred_check_branch
      %76 = sbr.rel (0) target = $region25
    $region24: #{tpu_custom_call.1} parent=1 // pred_region
      _
    $region25: #{tpu_custom_call.1} parent=1 // pred_fallthru
      _
    // Predicated region
    $region26: #{tpu_custom_call.1} parent=1 // pred_check
      _
    $region27: #{tpu_custom_call.1} parent=1 // pred_check_branch
      %78 = sbr.rel (0) target = $region29
    $region28: #{tpu_custom_call.1} parent=1 // pred_region
      %80 = vsyncadd [#allocation12], 0
      %s82 = sshll.u32 %s6, 4
      %s83 = int_to_ptr.hbm [resolvable:$true] %s82
      %s84 = sshll.u32 [#allocation11], 4
      %s85 = int_to_ptr.vmem [resolvable:$true] %s84
      %87 = dma.hbm_to_vmem [thread:$0]  %s83, 64, %s85, [#allocation12]
    $region29: #{tpu_custom_call.1} parent=1 // pred_fallthru
      _
    // Predicated region
    $region30: #{tpu_custom_call.1} parent=1 // pred_check
      _
    $region31: #{tpu_custom_call.1} parent=1 // pred_check_branch
      %89 = sbr.rel (0) target = $region33
    $region32: #{tpu_custom_call.1} parent=1 // pred_region
      %91 = dma.done [#allocation3], 64
    $region33: #{tpu_custom_call.1} parent=1 // pred_fallthru
      _
    // Predicated region
    $region34: #{tpu_custom_call.1} parent=1 // pred_check
      _
    $region35: #{tpu_custom_call.1} parent=1 // pred_check_branch
      %93 = sbr.rel (0) target = $region37
    $region36: #{tpu_custom_call.1} parent=1 // pred_region
      %95 = dma.done [#allocation6], 64
    $region37: #{tpu_custom_call.1} parent=1 // pred_fallthru
      _
    // Predicated region
    $region38: #{tpu_custom_call.1} parent=1 // pred_check
      _
    $region39: #{tpu_custom_call.1} parent=1 // pred_check_branch
      %97 = sbr.rel (0) target = $region41
    $region40: #{tpu_custom_call.1} parent=1 // pred_region
      %99 = dma.done [#allocation6], 64
    $region41: #{tpu_custom_call.1} parent=1 // pred_fallthru
      _
    // Predicated region
    $region42: #{tpu_custom_call.1} parent=1 // pred_check
      _
    $region43: #{tpu_custom_call.1} parent=1 // pred_check_branch
      %101 = sbr.rel (0) target = $region45
    $region44: #{tpu_custom_call.1} parent=1 // pred_region
      %103 = dma.done [#allocation9], 64
    $region45: #{tpu_custom_call.1} parent=1 // pred_fallthru
      _
    // Predicated region
    $region46: #{tpu_custom_call.1} parent=1 // pred_check
      _
    $region47: #{tpu_custom_call.1} parent=1 // pred_check_branch
      %105 = sbr.rel (0) target = $region49
    $region48: #{tpu_custom_call.1} parent=1 // pred_region
      %107 = dma.done [#allocation9], 64
    $region49: #{tpu_custom_call.1} parent=1 // pred_fallthru
      _
    // Predicated region
    $region50: #{tpu_custom_call.1} parent=1 // pred_check
      _
    $region51: #{tpu_custom_call.1} parent=1 // pred_check_branch
      %109 = sbr.rel (0) target = $region53
    $region52: #{tpu_custom_call.1} parent=1 // pred_region
      %111 = dma.done [#allocation12], 64
    $region53: #{tpu_custom_call.1} parent=1 // pred_fallthru
      _
    %v112 = vld [vmem:[#allocation2] sm:$0xf]
    %v113 = vld [vmem:[#allocation5] sm:$0xf]
    %v114 = vld [vmem:[#allocation7] sm:$0xf]
    %v115 = vld [vmem:[#allocation8] sm:$0xf]
    %v116 = vld [vmem:[#allocation10] sm:$0xf]
    %v117 = vld [vmem:[%s5] sm:$0xf]
    %v118 = vld [vmem:[#allocation11] sm:$0xf]
    %vm119 = vcmp.ge.f32.partialorder %v112, 0.0
    %vm120 = vcmp.le.f32.partialorder %v112, 1.0
    %vm121 = vmand %vm119, %vm120
    %v122 = vmax.f32 %v112, 0.0
    %v123 = vmin.f32 %v122, 1.0
    %125 = vset.pattern.permute.xlu0 1
    %126 = vperm.xlu0 %125, %v113
    %v127 = vpop.permute.xlu0 %126
    %vm129 = vcmp.ge.f32.partialorder %v123, %v127
    %130 = vset.pattern.permute.xlu0 0
    %131 = vperm.xlu0 %130, %v113
    %v132 = vpop.permute.xlu0 %131
    %v134 = vsel %vm129, %v127, %v132
    %136 = vset.pattern.permute.xlu0 1
    %137 = vperm.xlu0 %136, %v114
    %v138 = vpop.permute.xlu0 %137
    %140 = vset.pattern.permute.xlu0 0
    %141 = vperm.xlu0 %140, %v114
    %v142 = vpop.permute.xlu0 %141
    %v144 = vsel %vm129, %v138, %v142
    %146 = vset.pattern.permute.xlu0 1
    %147 = vperm.xlu0 %146, %v115
    %v148 = vpop.permute.xlu0 %147
    %150 = vset.pattern.permute.xlu0 0
    %151 = vperm.xlu0 %150, %v115
    %v152 = vpop.permute.xlu0 %151
    %v154 = vsel %vm129, %v148, %v152
    %156 = vset.pattern.permute.xlu0 1
    %157 = vperm.xlu0 %156, %v116
    %v158 = vpop.permute.xlu0 %157
    %160 = vset.pattern.permute.xlu0 0
    %161 = vperm.xlu0 %160, %v116
    %v162 = vpop.permute.xlu0 %161
    %v164 = vsel %vm129, %v158, %v162
    %166 = vset.pattern.permute.xlu0 1
    %167 = vperm.xlu0 %166, %v117
    %v168 = vpop.permute.xlu0 %167
    %170 = vset.pattern.permute.xlu0 0
    %171 = vperm.xlu0 %170, %v117
    %v172 = vpop.permute.xlu0 %171
    %v174 = vsel %vm129, %v168, %v172
    %176 = vset.pattern.permute.xlu0 1
    %177 = vperm.xlu0 %176, %v118
    %v178 = vpop.permute.xlu0 %177
    %180 = vset.pattern.permute.xlu0 0
    %181 = vperm.xlu0 %180, %v118
    %v182 = vpop.permute.xlu0 %181
    %v184 = vsel %vm129, %v178, %v182
    %185 = vset.pattern.permute.xlu0 2
    %186 = vperm.xlu0 %185, %v118
    %v187 = vpop.permute.xlu0 %186
    %v189 = vsel %vm129, %v187, %v178
    %190 = vset.pattern.permute.xlu0 2
    %191 = vperm.xlu0 %190, %v113
    %v192 = vpop.permute.xlu0 %191
    %vm194 = vcmp.ge.f32.partialorder %v123, %v192
    %v195 = vsel %vm194, %v192, %v134
    %196 = vset.pattern.permute.xlu0 2
    %197 = vperm.xlu0 %196, %v114
    %v198 = vpop.permute.xlu0 %197
    %v200 = vsel %vm194, %v198, %v144
    %201 = vset.pattern.permute.xlu0 2
    %202 = vperm.xlu0 %201, %v115
    %v203 = vpop.permute.xlu0 %202
    %v205 = vsel %vm194, %v203, %v154
    %206 = vset.pattern.permute.xlu0 2
    %207 = vperm.xlu0 %206, %v116
    %v208 = vpop.permute.xlu0 %207
    %v210 = vsel %vm194, %v208, %v164
    %211 = vset.pattern.permute.xlu0 2
    %212 = vperm.xlu0 %211, %v117
    %v213 = vpop.permute.xlu0 %212
    %v215 = vsel %vm194, %v213, %v174
    %v216 = vsel %vm194, %v187, %v184
    %217 = vset.pattern.permute.xlu0 3
    %218 = vperm.xlu0 %217, %v118
    %v219 = vpop.permute.xlu0 %218
    %v221 = vsel %vm194, %v219, %v189
    %222 = vset.pattern.permute.xlu0 3
    %223 = vperm.xlu0 %222, %v113
    %v224 = vpop.permute.xlu0 %223
    %vm226 = vcmp.ge.f32.partialorder %v123, %v224
    %v227 = vsel %vm226, %v224, %v195
    %228 = vset.pattern.permute.xlu0 3
    %229 = vperm.xlu0 %228, %v114
    %v230 = vpop.permute.xlu0 %229
    %v232 = vsel %vm226, %v230, %v200
    %233 = vset.pattern.permute.xlu0 3
    %234 = vperm.xlu0 %233, %v115
    %v235 = vpop.permute.xlu0 %234
    %v237 = vsel %vm226, %v235, %v205
    %238 = vset.pattern.permute.xlu0 3
    %239 = vperm.xlu0 %238, %v116
    %v240 = vpop.permute.xlu0 %239
    %v242 = vsel %vm226, %v240, %v210
    %243 = vset.pattern.permute.xlu0 3
    %244 = vperm.xlu0 %243, %v117
    %v245 = vpop.permute.xlu0 %244
    %v247 = vsel %vm226, %v245, %v215
    %v248 = vsel %vm226, %v219, %v216
    %249 = vset.pattern.permute.xlu0 4
    %250 = vperm.xlu0 %249, %v118
    %v251 = vpop.permute.xlu0 %250
    %v253 = vsel %vm226, %v251, %v221
    %254 = vset.pattern.permute.xlu0 4
    %255 = vperm.xlu0 %254, %v113
    %v256 = vpop.permute.xlu0 %255
    %vm258 = vcmp.ge.f32.partialorder %v123, %v256
    %v259 = vsel %vm258, %v256, %v227
    %260 = vset.pattern.permute.xlu0 4
    %261 = vperm.xlu0 %260, %v114
    %v262 = vpop.permute.xlu0 %261
    %v264 = vsel %vm258, %v262, %v232
    %265 = vset.pattern.permute.xlu0 4
    %266 = vperm.xlu0 %265, %v115
    %v267 = vpop.permute.xlu0 %266
    %v269 = vsel %vm258, %v267, %v237
    %270 = vset.pattern.permute.xlu0 4
    %271 = vperm.xlu0 %270, %v116
    %v272 = vpop.permute.xlu0 %271
    %v274 = vsel %vm258, %v272, %v242
    %275 = vset.pattern.permute.xlu0 4
    %276 = vperm.xlu0 %275, %v117
    %v277 = vpop.permute.xlu0 %276
    %v279 = vsel %vm258, %v277, %v247
    %v280 = vsel %vm258, %v251, %v248
    %281 = vset.pattern.permute.xlu0 5
    %282 = vperm.xlu0 %281, %v118
    %v283 = vpop.permute.xlu0 %282
    %v285 = vsel %vm258, %v283, %v253
    %v286 = vsub.f32 %v123, %v259
    %v287 = vmul.f32 %v286, %v264
    %v288 = vsub.f32 1.0, %v287
    %v289 = vmul.f32 %v287, %v287
    %v290 = vmul.f32 %v287, %v288
    %v291 = vmul.f32 %v279, %v289
    %v292 = vmul.f32 %v280, %v290
    %v293 = vadd.f32 %v291, %v292
    %v294 = vmul.f32 %v274, %v293
    %v295 = vadd.f32 %v280, %v285
    %v296 = vmul.f32 %v279, 2.0
    %v297 = vsub.f32 %v295, %v296
    %v298 = vmul.f32 %v297, %v290
    %v299 = vadd.f32 %v279, %v298
    %v300 = vrcp.pop %v299
    %v301 = vmul.f32 %v299, %v300
    %v302 = vsub.f32 1.0, %v301
    %v303 = vmul.f32 %v300, %v302
    %v304 = vadd.f32 %v300, %v303
    %vm305 = vweird.f32 %v299
    %vm306 = vweird.f32 %v300
    %vm307 = vmor %vm305, %vm306
    %v308 = vsel %vm307, %v300, %v304
    %v309 = vand.u32 2147483647, %v299
    %vm310 = vcmp.eq.f32.partialorder %v309, 8.507059e+37
    %v311 = vand.u32 %v299, 2147483648
    %v312 = vor.u32 1.1754944e-38, %v311
    %v313 = vsel %vm310, %v312, %v308
    %v314 = vmul.f32 1.0, %v313
    %v315 = vmul.f32 %v294, %v314
    %v316 = vadd.f32 %v269, %v315
    %v317 = vmul.f32 %v279, %v279
    %v318 = vmul.f32 %v285, %v289
    %v319 = vmul.f32 %v296, %v290
    %v320 = vadd.f32 %v318, %v319
    %v321 = vmul.f32 %v280, %v288
    %v322 = vmul.f32 %v321, %v288
    %v323 = vadd.f32 %v320, %v322
    %v324 = vmul.f32 %v317, %v323
    %v325 = vmul.f32 %v324, %v314
    %v326 = vmul.f32 %v325, %v314
    %v327 = vlog2.pop %v326
    %v328 = vmul.f32 %v327, 0.6931472
    %v329 = vsel %vm121, %v316, %v112
    %330 = vst [vmem:[#allocation13] sm:$0xf] %v329
    %v331 = vsel %vm121, %v328, 0.0
    %332 = vst [vmem:[#allocation14] sm:$0xf] %v331
    // Predicated region
    $region54: #{tpu_custom_call.1} parent=1 // pred_check
      _
    $region55: #{tpu_custom_call.1} parent=1 // pred_check_branch
      %334 = sbr.rel (0) target = $region57
    $region56: #{tpu_custom_call.1} parent=1 // pred_region
      %336 = vsyncadd [#allocation4], 0
      %s338 = sshll.u32 [#allocation13], 4
      %s339 = int_to_ptr.vmem [resolvable:$true] %s338
      %s340 = sshll.u32 %s7, 4
      %s341 = int_to_ptr.hbm [resolvable:$true] %s340
      %343 = dma.vmem_to_hbm [thread:$0]  %s339, 64, %s341, [#allocation4]
    $region57: #{tpu_custom_call.1} parent=1 // pred_fallthru
      _
    // Predicated region
    $region58: #{tpu_custom_call.1} parent=1 // pred_check
      _
    $region59: #{tpu_custom_call.1} parent=1 // pred_check_branch
      %345 = sbr.rel (0) target = $region61
    $region60: #{tpu_custom_call.1} parent=1 // pred_region
      %347 = vsyncadd [#allocation15], 0
      %s349 = sshll.u32 [#allocation14], 4
      %s350 = int_to_ptr.vmem [resolvable:$true] %s349
      %s351 = sshll.u32 %s8, 4
      %s352 = int_to_ptr.hbm [resolvable:$true] %s351
      %354 = dma.vmem_to_hbm [thread:$0]  %s350, 64, %s352, [#allocation15]
    $region61: #{tpu_custom_call.1} parent=1 // pred_fallthru
      _
    // Predicated region
    $region62: #{tpu_custom_call.1} parent=1 // pred_check
      _
    $region63: #{tpu_custom_call.1} parent=1 // pred_check_branch
      %356 = sbr.rel (0) target = $region65
    $region64: #{tpu_custom_call.1} parent=1 // pred_region
      %358 = dma.done [#allocation4], 64
    $region65: #{tpu_custom_call.1} parent=1 // pred_fallthru
      _
    // Predicated region
    $region66: #{tpu_custom_call.1} parent=1 // pred_check
      _
    $region67: #{tpu_custom_call.1} parent=1 // pred_check_branch
      %360 = sbr.rel (0) target = $region69
    $region68: #{tpu_custom_call.1} parent=1 // pred_region
      %362 = dma.done [#allocation15], 64
    $region69: #{tpu_custom_call.1} parent=1 // pred_fallthru
      _
    %363 = vsyncpa [#allocation3], 1
    %364 = vsyncpa [#allocation6], 1
    %365 = vsyncpa [#allocation9], 1
    %366 = vsyncpa [#allocation12], 1
    %367 = vsyncpa [#allocation4], 1
    %368 = vsyncpa [#allocation15], 1

</llo_original>
